<compile_context>
chip_gen: v6e
topology: v6e:2x2x1
jax: 0.10.0
libtpu: 0.0.40
codegen_flags: <defaults>
</compile_context>

<pallas_src>
import jax
import jax.numpy as jnp
from jax.experimental import pallas as pl
from jax.experimental.pallas import tpu as pltpu

BN_EPS = 1e-5  # PyTorch BatchNorm2d default


def _cdiv(a, b):
    return (a + b - 1) // b


def _round_up(a, b):
    return _cdiv(a, b) * b


def _vmem_budget_bytes():
    """~3/4 of physical VMEM: ~96 MiB on v5e/v6e (128 MiB phys), ~48 MiB on v7x (64 MiB)."""
    phys = None
    try:
        info = pltpu.get_tpu_info()
        for name in ("vmem_capacity_bytes", "vmem_bytes", "vmem_size_bytes"):
            val = getattr(info, name, None)
            if val:
                phys = int(val)
                break
    except Exception:
        phys = None
    if not phys:
        phys = 64 * 1024 * 1024  # conservative fallback (v7x per-core size)
    return min(phys * 3 // 4, 100 * 1024 * 1024)


def _conv_pair(x1_ref, x2_ref, a_ref, b_ref):
    """ReLU + both 1x1 strided convs as two MXU matmuls; f32 accumulation.

    Inputs stay in their native dtype on the MXU (bf16 stays bf16)."""
    y = jnp.dot(jnp.maximum(x1_ref[...], 0), a_ref[...],
                preferred_element_type=jnp.float32)
    y = y + jnp.dot(jnp.maximum(x2_ref[...], 0), b_ref[...],
                    preferred_element_type=jnp.float32)
    return y


def _stats_kernel(x1_ref, x2_ref, a_ref, b_ref, stat_ref):
    """Pass 1: per-tile partial BN statistics (parallel over M tiles)."""
    y = _conv_pair(x1_ref, x2_ref, a_ref, b_ref)            # (tile_r, F*C_out) f32
    stat_ref[0:1, :] = jnp.sum(y, axis=0, keepdims=True)
    stat_ref[1:2, :] = jnp.sum(y * y, axis=0, keepdims=True)


def _normalize_kernel(x1_ref, x2_ref, a_ref, b_ref, scale_ref, shift_ref, o_ref):
    """Pass 2: recompute y and apply the folded BN FMA (parallel over M tiles)."""
    y = _conv_pair(x1_ref, x2_ref, a_ref, b_ref)
    o_ref[...] = (y * scale_ref[...] + shift_ref[...]).astype(o_ref.dtype)


@jax.jit
def factorized_reduce(x, w1, w2, gamma, beta):
    """x: (N, C_in, H, W) NCHW.  w1/w2: (C_half, C_in, 1, 1).  gamma/beta: (C_out,)."""
    N, C_in, H, W = x.shape
    C_half = w1.shape[0]
    C_out = 2 * C_half
    assert H % 2 == 0 and W % 2 == 0, "even spatial dims required (torch.cat needs equal sizes)"
    Ho, Wo = H // 2, W // 2
    M = N * Ho * Wo
    dtype = x.dtype
    itemsize = jnp.dtype(dtype).itemsize

    # ---- lane-density fold factor: make the kernels' last dims >= 128 lanes ------
    F = min(max(1, _cdiv(128, C_out), _cdiv(128, C_in)), 128)
    Fk = F * C_in                       # folded contraction width
    Fc = F * C_out                      # folded (lane-dense) output width

    # ---- generation-aware tile sizing --------------------------------------------
    sublane = {4: 8, 2: 16, 1: 32}.get(itemsize, 8)     # dtype-correct sublane multiple
    budget = _vmem_budget_bytes()
    lane_in = _round_up(Fk, 128)
    lane_out = _round_up(Fc, 128)
    # A,B weights, double-buffered (constant index_map, but budget conservatively).
    w_bytes = 2 * 2 * _round_up(Fk, sublane) * lane_out * itemsize
    # Per folded row: x1+x2 double-buffered, out double-buffered, plus the f32 y temp.
    row_bytes = 2 * (2 * lane_in * itemsize) + 2 * lane_out * itemsize + lane_out * 4
    R = _cdiv(M, F)
    avail = max(budget - w_bytes - (4 << 20), row_bytes * sublane)
    tile_r = (avail // row_bytes) // sublane * sublane
    tile_r = int(max(sublane, min(tile_r, 8192, _round_up(R, sublane))))
    n_tiles = _cdiv(R, tile_r)
    R_pad = n_tiles * tile_r
    M_pad = R_pad * F

    # ---- input layout plumbing (XLA): one NHWC transpose + strided slices --------
    x_nhwc = jnp.transpose(x, (0, 2, 3, 1))                  # (N, H, W, C_in)
    x1 = x_nhwc[:, 0::2, 0::2, :].reshape(M, C_in)           # conv_1 pixels (2i,   2j)
    x2 = x_nhwc[:, 1::2, 1::2, :].reshape(M, C_in)           # conv_2 pixels (2i+1, 2j+1)
    if M_pad != M:
        pad = ((0, M_pad - M), (0, 0))                       # zero rows: relu(0)=0 -> y=0
        x1 = jnp.pad(x1, pad)
        x2 = jnp.pad(x2, pad)
    x1f = x1.reshape(R_pad, Fk)                              # free row-major reshape
    x2f = x2.reshape(R_pad, Fk)

    # ---- block-replicated weights: one matmul pair -> [conv1|conv2] per pixel ----
    w1_m = w1.reshape(C_half, C_in).T.astype(dtype)          # (C_in, C_half)
    w2_m = w2.reshape(C_half, C_in).T.astype(dtype)
    z = jnp.zeros((C_in, C_half), dtype=dtype)
    eye_f = jnp.eye(F, dtype=dtype)
    a_blk = jnp.kron(eye_f, jnp.concatenate([w1_m, z], axis=1))   # (Fk, Fc)
    b_blk = jnp.kron(eye_f, jnp.concatenate([z, w2_m], axis=1))   # (Fk, Fc)
    # The zero blocks cost <= 2F redundant MXU pushes; free in this HBM-bound regime.
    # TODO(synk): dense two-matmul variant (separate o_ref column halves) for a
    # hypothetical MXU-bound configuration.

    x_spec = pl.BlockSpec((tile_r, Fk), lambda i: (i, 0))
    w_spec = pl.BlockSpec((Fk, Fc), lambda i: (0, 0))
    # TODO(synk): if profiling shows exposed input DMA at these tile sizes, bump the
    # x specs to pipeline_mode=pl.Buffered(3) (keep depth 2 on VMEM-tight v7x).

    mm_flops = 2 * 2 * R_pad * Fk * Fc                        # two matmuls per pass
    x_bytes = 2 * R_pad * Fk * itemsize
    w_hbm_bytes = 2 * Fk * Fc * itemsize

    # ---- pass 1: per-tile partial BN statistics (fully parallel over tiles) ------
    stats = pl.pallas_call(
        _stats_kernel,
        out_shape=jax.ShapeDtypeStruct((n_tiles, 2, Fc), jnp.float32),
        grid_spec=pltpu.PrefetchScalarGridSpec(
            num_scalar_prefetch=0,
            grid=(n_tiles,),
            in_specs=[x_spec, x_spec, w_spec, w_spec],
            out_specs=pl.BlockSpec((None, 2, Fc), lambda i: (i, 0, 0)),
        ),
        compiler_params=pltpu.CompilerParams(
            dimension_semantics=("parallel",),
            vmem_limit_bytes=budget,
        ),
        cost_estimate=pl.CostEstimate(
            flops=mm_flops, transcendentals=0,
            bytes_accessed=x_bytes + w_hbm_bytes + n_tiles * 2 * Fc * 4),
    )(x1f, x2f, a_blk, b_blk)

    # ---- tiny XLA reduce: fold BN into a single FMA (scale, shift) ----------------
    tot = jnp.sum(stats, axis=0)                              # (2, Fc) f32
    sum_y = jnp.sum(tot[0].reshape(F, C_out), axis=0)         # per true channel
    ssq_y = jnp.sum(tot[1].reshape(F, C_out), axis=0)
    mean = sum_y / M                                          # true M; pad rows contribute 0
    var = jnp.maximum(ssq_y / M - mean * mean, 0.0)           # clamp slightly-negative f32 var
    # TODO(synk): mean-centered per-tile partials (Chan/Welford) if the single-pass
    # f32 E[y^2]-E[y]^2 ever loses precision at very large N*Ho*Wo.
    scale = gamma.astype(jnp.float32) * jax.lax.rsqrt(var + BN_EPS)
    shift = beta.astype(jnp.float32) - mean * scale
    scale_f = jnp.tile(scale, F).reshape(1, Fc)               # column f*C_out+c -> channel c
    shift_f = jnp.tile(shift, F).reshape(1, Fc)

    # ---- pass 2: recompute y, apply FMA, lane-dense store (fully parallel) -------
    out_f = pl.pallas_call(
        _normalize_kernel,
        out_shape=jax.ShapeDtypeStruct((R_pad, Fc), dtype),
        grid_spec=pltpu.PrefetchScalarGridSpec(
            num_scalar_prefetch=0,
            grid=(n_tiles,),
            in_specs=[x_spec, x_spec, w_spec, w_spec,
                      pl.BlockSpec((1, Fc), lambda i: (0, 0)),
                      pl.BlockSpec((1, Fc), lambda i: (0, 0))],
            out_specs=pl.BlockSpec((tile_r, Fc), lambda i: (i, 0)),
        ),
        compiler_params=pltpu.CompilerParams(
            dimension_semantics=("parallel",),
            vmem_limit_bytes=budget,
        ),
        cost_estimate=pl.CostEstimate(
            flops=mm_flops, transcendentals=0,
            bytes_accessed=x_bytes + w_hbm_bytes + R_pad * Fc * itemsize),
    )(x1f, x2f, a_blk, b_blk, scale_f, shift_f)

    # TODO(synk): running_mean / running_var buffer updates of nn.BatchNorm2d
    # (training-time side effect) are not reproduced; only the forward output is.
    out = out_f.reshape(M_pad, C_out)[:M].reshape(N, Ho, Wo, C_out)
    return jnp.transpose(out, (0, 3, 1, 2))                   # back to NCHW


def _reference(x, w1, w2, gamma, beta):
    """Pure-JAX reference mirroring the PyTorch module (training-mode BN)."""
    dn = ("NCHW", "OIHW", "NCHW")
    xr = jnp.maximum(x, 0.0)
    y1 = jax.lax.conv_general_dilated(xr, w1, (2, 2), "VALID", dimension_numbers=dn)
    y2 = jax.lax.conv_general_dilated(xr[:, :, 1:, 1:], w2, (2, 2), "VALID",
                                      dimension_numbers=dn)
    y = jnp.concatenate([y1, y2], axis=1)
    mean = y.mean(axis=(0, 2, 3), keepdims=True)
    var = ((y - mean) ** 2).mean(axis=(0, 2, 3), keepdims=True)
    return ((y - mean) / jnp.sqrt(var + BN_EPS)) * gamma.reshape(1, -1, 1, 1) \
           + beta.reshape(1, -1, 1, 1)


if __name__ == "__main__":
    N, C_in, H, W = 2, 4, 16, 16
    C_out = 8
    C_half = C_out // 2

    key = jax.random.PRNGKey(0)
    kx, k1, k2 = jax.random.split(key, 3)
    x = jax.random.normal(kx, (N, C_in, H, W), dtype=jnp.float32)
    w1 = jax.random.normal(k1, (C_half, C_in, 1, 1), dtype=jnp.float32) * 0.5
    w2 = jax.random.normal(k2, (C_half, C_in, 1, 1), dtype=jnp.float32) * 0.5
    gamma = jnp.ones((C_out,), dtype=jnp.float32)   # PyTorch BN affine default init
    beta = jnp.zeros((C_out,), dtype=jnp.float32)

    out = jax.block_until_ready(factorized_reduce(x, w1, w2, gamma, beta))
    ref = jax.block_until_ready(_reference(x, w1, w2, gamma, beta))

    assert out.shape == (N, C_out, H // 2, W // 2), out.shape
    err = float(jnp.max(jnp.abs(out - ref)))
    assert err < 1e-4, err
    print("KERNEL_OK")
</pallas_src>

<mosaic_0001>
module attributes {stable_mosaic.version = 11 : i64} {
  func.func @_stats_kernel(%arg0: i32, %arg1: memref<8x128xf32, #tpu.memory_space<vmem>>, %arg2: memref<8x128xf32, #tpu.memory_space<vmem>>, %arg3: memref<128x256xf32, #tpu.memory_space<vmem>>, %arg4: memref<128x256xf32, #tpu.memory_space<vmem>>, %arg5: memref<1x2x256xf32, #tpu.memory_space<vmem>>) attributes {dimension_semantics = [#tpu.dimension_semantics<parallel>], iteration_bounds = array<i64: 1>, scalar_prefetch = 0 : i64, scratch_operands = 0 : i64, tpu.core_type = #tpu.core_type<tc>, window_params = [{transform_indices = @transform_0, window_bounds = array<i64: 8, 128>}, {transform_indices = @transform_1, window_bounds = array<i64: 8, 128>}, {pipeline_mode = #tpu.pipeline_mode<synchronous>, transform_indices = @transform_2, window_bounds = array<i64: 128, 256>}, {pipeline_mode = #tpu.pipeline_mode<synchronous>, transform_indices = @transform_3, window_bounds = array<i64: 128, 256>}, {transform_indices = @transform_4, window_bounds = array<i64: 1, 2, 256>}]} {
    %c0 = arith.constant 0 : index
    %c0_0 = arith.constant 0 : index
    %0 = vector.load %arg1[%c0, %c0_0] : memref<8x128xf32, #tpu.memory_space<vmem>>, vector<8x128xf32>
    %cst = arith.constant 0.000000e+00 : f32
    %1 = vector.broadcast %cst : f32 to vector<8x128xf32>
    %2 = arith.maximumf %0, %1 : vector<8x128xf32>
    %c0_1 = arith.constant 0 : index
    %c0_2 = arith.constant 0 : index
    %3 = vector.load %arg3[%c0_1, %c0_2] : memref<128x256xf32, #tpu.memory_space<vmem>>, vector<128x256xf32>
    %cst_3 = arith.constant dense<0.000000e+00> : vector<8x256xf32>
    %4 = tpu.matmul %2, %3, %cst_3 {dimension_numbers = #tpu.dot_dimension_numbers<[1], [0], [0], [1], [0, 0, 1, 1], [], []>} : vector<8x128xf32>, vector<128x256xf32>, vector<8x256xf32> -> vector<8x256xf32>
    %c0_4 = arith.constant 0 : index
    %c0_5 = arith.constant 0 : index
    %5 = vector.load %arg2[%c0_4, %c0_5] : memref<8x128xf32, #tpu.memory_space<vmem>>, vector<8x128xf32>
    %cst_6 = arith.constant 0.000000e+00 : f32
    %6 = vector.broadcast %cst_6 : f32 to vector<8x128xf32>
    %7 = arith.maximumf %5, %6 : vector<8x128xf32>
    %c0_7 = arith.constant 0 : index
    %c0_8 = arith.constant 0 : index
    %8 = vector.load %arg4[%c0_7, %c0_8] : memref<128x256xf32, #tpu.memory_space<vmem>>, vector<128x256xf32>
    %cst_9 = arith.constant dense<0.000000e+00> : vector<8x256xf32>
    %9 = tpu.matmul %7, %8, %cst_9 {dimension_numbers = #tpu.dot_dimension_numbers<[1], [0], [0], [1], [0, 0, 1, 1], [], []>} : vector<8x128xf32>, vector<128x256xf32>, vector<8x256xf32> -> vector<8x256xf32>
    %10 = arith.addf %4, %9 : vector<8x256xf32>
    %cst_10 = arith.constant dense<0.000000e+00> : vector<256xf32>
    %11 = vector.multi_reduction <add>, %10, %cst_10 [0] : vector<8x256xf32> to vector<256xf32>
    %12 = vector.shape_cast %11 : vector<256xf32> to vector<1x256xf32>
    %c0_11 = arith.constant 0 : index
    %c0_12 = arith.constant 0 : index
    %c0_13 = arith.constant 0 : index
    %13 = vector.load %arg5[%c0_11, %c0_12, %c0_13] : memref<1x2x256xf32, #tpu.memory_space<vmem>>, vector<1x1x256xf32>
    %14 = vector.shape_cast %13 : vector<1x1x256xf32> to vector<1x256xf32>
    %15 = vector.shape_cast %12 : vector<1x256xf32> to vector<1x1x256xf32>
    tpu.vector_store %arg5[%c0_11, %c0_12, %c0_13], %15 {strides = array<i32>} : memref<1x2x256xf32, #tpu.memory_space<vmem>>, vector<1x1x256xf32>,
    %16 = arith.mulf %10, %10 : vector<8x256xf32>
    %cst_14 = arith.constant dense<0.000000e+00> : vector<256xf32>
    %17 = vector.multi_reduction <add>, %16, %cst_14 [0] : vector<8x256xf32> to vector<256xf32>
    %18 = vector.shape_cast %17 : vector<256xf32> to vector<1x256xf32>
    %c0_15 = arith.constant 0 : index
    %c1 = arith.constant 1 : index
    %c0_16 = arith.constant 0 : index
    %19 = vector.load %arg5[%c0_15, %c1, %c0_16] : memref<1x2x256xf32, #tpu.memory_space<vmem>>, vector<1x1x256xf32>
    %20 = vector.shape_cast %19 : vector<1x1x256xf32> to vector<1x256xf32>
    %21 = vector.shape_cast %18 : vector<1x256xf32> to vector<1x1x256xf32>
    tpu.vector_store %arg5[%c0_15, %c1, %c0_16], %21 {strides = array<i32>} : memref<1x2x256xf32, #tpu.memory_space<vmem>>, vector<1x1x256xf32>,
    return
  }
  func.func @transform_0(%arg0: i32) -> (i32, i32) {
    %c0_i32 = arith.constant 0 : i32
    %c0_i32_0 = arith.constant 0 : i32
    return %arg0, %c0_i32 : i32, i32
  }
  func.func @transform_1(%arg0: i32) -> (i32, i32) {
    %c0_i32 = arith.constant 0 : i32
    %c0_i32_0 = arith.constant 0 : i32
    return %arg0, %c0_i32 : i32, i32
  }
  func.func @transform_2(%arg0: i32) -> (i32, i32) {
    %c0_i32 = arith.constant 0 : i32
    %c0_i32_0 = arith.constant 0 : i32
    %c0_i32_1 = arith.constant 0 : i32
    return %c0_i32, %c0_i32_0 : i32, i32
  }
  func.func @transform_3(%arg0: i32) -> (i32, i32) {
    %c0_i32 = arith.constant 0 : i32
    %c0_i32_0 = arith.constant 0 : i32
    %c0_i32_1 = arith.constant 0 : i32
    return %c0_i32, %c0_i32_0 : i32, i32
  }
  func.func @transform_4(%arg0: i32) -> (i32, i32, i32) {
    %c0_i32 = arith.constant 0 : i32
    %c0_i32_0 = arith.constant 0 : i32
    %c0_i32_1 = arith.constant 0 : i32
    return %arg0, %c0_i32, %c0_i32_0 : i32, i32, i32
  }
}

module attributes {stable_mosaic.version = 11 : i64} {
  func.func @_normalize_kernel(%arg0: i32, %arg1: memref<8x128xf32, #tpu.memory_space<vmem>>, %arg2: memref<8x128xf32, #tpu.memory_space<vmem>>, %arg3: memref<128x256xf32, #tpu.memory_space<vmem>>, %arg4: memref<128x256xf32, #tpu.memory_space<vmem>>, %arg5: memref<1x256xf32, #tpu.memory_space<vmem>>, %arg6: memref<1x256xf32, #tpu.memory_space<vmem>>, %arg7: memref<8x256xf32, #tpu.memory_space<vmem>>) attributes {dimension_semantics = [#tpu.dimension_semantics<parallel>], iteration_bounds = array<i64: 1>, scalar_prefetch = 0 : i64, scratch_operands = 0 : i64, tpu.core_type = #tpu.core_type<tc>, window_params = [{transform_indices = @transform_0, window_bounds = array<i64: 8, 128>}, {transform_indices = @transform_1, window_bounds = array<i64: 8, 128>}, {pipeline_mode = #tpu.pipeline_mode<synchronous>, transform_indices = @transform_2, window_bounds = array<i64: 128, 256>}, {pipeline_mode = #tpu.pipeline_mode<synchronous>, transform_indices = @transform_3, window_bounds = array<i64: 128, 256>}, {pipeline_mode = #tpu.pipeline_mode<synchronous>, transform_indices = @transform_4, window_bounds = array<i64: 1, 256>}, {pipeline_mode = #tpu.pipeline_mode<synchronous>, transform_indices = @transform_5, window_bounds = array<i64: 1, 256>}, {transform_indices = @transform_6, window_bounds = array<i64: 8, 256>}]} {
    %c0 = arith.constant 0 : index
    %c0_0 = arith.constant 0 : index
    %0 = vector.load %arg1[%c0, %c0_0] : memref<8x128xf32, #tpu.memory_space<vmem>>, vector<8x128xf32>
    %cst = arith.constant 0.000000e+00 : f32
    %1 = vector.broadcast %cst : f32 to vector<8x128xf32>
    %2 = arith.maximumf %0, %1 : vector<8x128xf32>
    %c0_1 = arith.constant 0 : index
    %c0_2 = arith.constant 0 : index
    %3 = vector.load %arg3[%c0_1, %c0_2] : memref<128x256xf32, #tpu.memory_space<vmem>>, vector<128x256xf32>
    %cst_3 = arith.constant dense<0.000000e+00> : vector<8x256xf32>
    %4 = tpu.matmul %2, %3, %cst_3 {dimension_numbers = #tpu.dot_dimension_numbers<[1], [0], [0], [1], [0, 0, 1, 1], [], []>} : vector<8x128xf32>, vector<128x256xf32>, vector<8x256xf32> -> vector<8x256xf32>
    %c0_4 = arith.constant 0 : index
    %c0_5 = arith.constant 0 : index
    %5 = vector.load %arg2[%c0_4, %c0_5] : memref<8x128xf32, #tpu.memory_space<vmem>>, vector<8x128xf32>
    %cst_6 = arith.constant 0.000000e+00 : f32
    %6 = vector.broadcast %cst_6 : f32 to vector<8x128xf32>
    %7 = arith.maximumf %5, %6 : vector<8x128xf32>
    %c0_7 = arith.constant 0 : index
    %c0_8 = arith.constant 0 : index
    %8 = vector.load %arg4[%c0_7, %c0_8] : memref<128x256xf32, #tpu.memory_space<vmem>>, vector<128x256xf32>
    %cst_9 = arith.constant dense<0.000000e+00> : vector<8x256xf32>
    %9 = tpu.matmul %7, %8, %cst_9 {dimension_numbers = #tpu.dot_dimension_numbers<[1], [0], [0], [1], [0, 0, 1, 1], [], []>} : vector<8x128xf32>, vector<128x256xf32>, vector<8x256xf32> -> vector<8x256xf32>
    %10 = arith.addf %4, %9 : vector<8x256xf32>
    %c0_10 = arith.constant 0 : index
    %c0_11 = arith.constant 0 : index
    %11 = vector.load %arg5[%c0_10, %c0_11] : memref<1x256xf32, #tpu.memory_space<vmem>>, vector<1x256xf32>
    %12 = vector.broadcast %11 : vector<1x256xf32> to vector<8x256xf32>
    %13 = arith.mulf %10, %12 : vector<8x256xf32>
    %c0_12 = arith.constant 0 : index
    %c0_13 = arith.constant 0 : index
    %14 = vector.load %arg6[%c0_12, %c0_13] : memref<1x256xf32, #tpu.memory_space<vmem>>, vector<1x256xf32>
    %15 = vector.broadcast %14 : vector<1x256xf32> to vector<8x256xf32>
    %16 = arith.addf %13, %15 : vector<8x256xf32>
    %c0_14 = arith.constant 0 : index
    %c0_15 = arith.constant 0 : index
    %17 = vector.load %arg7[%c0_14, %c0_15] : memref<8x256xf32, #tpu.memory_space<vmem>>, vector<8x256xf32>
    tpu.vector_store %arg7[%c0_14, %c0_15], %16 {strides = array<i32>} : memref<8x256xf32, #tpu.memory_space<vmem>>, vector<8x256xf32>,
    return
  }
  func.func @transform_0(%arg0: i32) -> (i32, i32) {
    %c0_i32 = arith.constant 0 : i32
    %c0_i32_0 = arith.constant 0 : i32
    return %arg0, %c0_i32 : i32, i32
  }
  func.func @transform_1(%arg0: i32) -> (i32, i32) {
    %c0_i32 = arith.constant 0 : i32
    %c0_i32_0 = arith.constant 0 : i32
    return %arg0, %c0_i32 : i32, i32
  }
  func.func @transform_2(%arg0: i32) -> (i32, i32) {
    %c0_i32 = arith.constant 0 : i32
    %c0_i32_0 = arith.constant 0 : i32
    %c0_i32_1 = arith.constant 0 : i32
    return %c0_i32, %c0_i32_0 : i32, i32
  }
  func.func @transform_3(%arg0: i32) -> (i32, i32) {
    %c0_i32 = arith.constant 0 : i32
    %c0_i32_0 = arith.constant 0 : i32
    %c0_i32_1 = arith.constant 0 : i32
    return %c0_i32, %c0_i32_0 : i32, i32
  }
  func.func @transform_4(%arg0: i32) -> (i32, i32) {
    %c0_i32 = arith.constant 0 : i32
    %c0_i32_0 = arith.constant 0 : i32
    %c0_i32_1 = arith.constant 0 : i32
    return %c0_i32, %c0_i32_0 : i32, i32
  }
  func.func @transform_5(%arg0: i32) -> (i32, i32) {
    %c0_i32 = arith.constant 0 : i32
    %c0_i32_0 = arith.constant 0 : i32
    %c0_i32_1 = arith.constant 0 : i32
    return %c0_i32, %c0_i32_0 : i32, i32
  }
  func.func @transform_6(%arg0: i32) -> (i32, i32) {
    %c0_i32 = arith.constant 0 : i32
    %c0_i32_0 = arith.constant 0 : i32
    return %arg0, %c0_i32 : i32, i32
  }
}

</mosaic_0001>

<llo_original>
// kernel: squeeze.2
$region0: #{squeeze.2}
  %s0 = inlined_call_operand.vmem [shape: f32[256], index: 0, kind: input, shape index: {}]
  %s1 = inlined_call_operand.vmem [shape: f32[32,8], index: 1, kind: output, shape index: {}]
  $region1: #{squeeze.2} parent=0
    #allocation0 [shape = 'u8[4096]{0}', space=vmem, size = 0x1000, scoped, tag = 'scoped mem for input reshape']
    %s3 = sshll.u32 1, 2
    %s4 = ssub.s32 %s3, 1
    %v5 = vld [vmem:[%s0] sm:%s4]
    %6 = vst [vmem:[#allocation0] sm:%s4] %v5
    %v7 = vld [vmem:[#allocation0] sm:$0x3]
    %vm8 = vcmask 64512
    %9 = vst.msk [vmem:[%s1] ss:$16 sm:$0x3] %vm8, %v7
    %v10 = vld [vmem:[#allocation0] sm:$0x3]
    %11 = vrot.lane.b32.xlu0 %v10, 120
    %v12 = vpop.permute.xlu0 %11
    %vm13 = vcmask 64512
    %s14 = scalar_lea.vmem %s1, 1
    %15 = vst.msk [vmem:[%s14] ss:$16 sm:$0x3] %vm13, %v12
    %v16 = vld [vmem:[#allocation0] sm:$0x3]
    %17 = vrot.lane.b32.xlu0 %v16, 112
    %v18 = vpop.permute.xlu0 %17
    %vm19 = vcmask 64512
    %s20 = scalar_lea.vmem %s1, 2
    %21 = vst.msk [vmem:[%s20] ss:$16 sm:$0x3] %vm19, %v18
    %v22 = vld [vmem:[#allocation0] sm:$0x3]
    %23 = vrot.lane.b32.xlu0 %v22, 104
    %v24 = vpop.permute.xlu0 %23
    %vm25 = vcmask 64512
    %s26 = scalar_lea.vmem %s1, 3
    %27 = vst.msk [vmem:[%s26] ss:$16 sm:$0x3] %vm25, %v24
    %v28 = vld [vmem:[#allocation0] sm:$0x3]
    %29 = vrot.lane.b32.xlu0 %v28, 96
    %v30 = vpop.permute.xlu0 %29
    %vm31 = vcmask 64512
    %s32 = scalar_lea.vmem %s1, 4
    %33 = vst.msk [vmem:[%s32] ss:$16 sm:$0x3] %vm31, %v30
    %v34 = vld [vmem:[#allocation0] sm:$0x3]
    %35 = vrot.lane.b32.xlu0 %v34, 88
    %v36 = vpop.permute.xlu0 %35
    %vm37 = vcmask 64512
    %s38 = scalar_lea.vmem %s1, 5
    %39 = vst.msk [vmem:[%s38] ss:$16 sm:$0x3] %vm37, %v36
    %v40 = vld [vmem:[#allocation0] sm:$0x3]
    %41 = vrot.lane.b32.xlu0 %v40, 80
    %v42 = vpop.permute.xlu0 %41
    %vm43 = vcmask 64512
    %s44 = scalar_lea.vmem %s1, 6
    %45 = vst.msk [vmem:[%s44] ss:$16 sm:$0x3] %vm43, %v42
    %v46 = vld [vmem:[#allocation0] sm:$0x3]
    %47 = vrot.lane.b32.xlu0 %v46, 72
    %v48 = vpop.permute.xlu0 %47
    %vm49 = vcmask 64512
    %s50 = scalar_lea.vmem %s1, 7
    %51 = vst.msk [vmem:[%s50] ss:$16 sm:$0x3] %vm49, %v48
    %v52 = vld [vmem:[#allocation0] sm:$0x3]
    %53 = vrot.lane.b32.xlu0 %v52, 64
    %v54 = vpop.permute.xlu0 %53
    %vm55 = vcmask 64512
    %s56 = scalar_lea.vmem %s1, 8
    %57 = vst.msk [vmem:[%s56] ss:$16 sm:$0x3] %vm55, %v54
    %v58 = vld [vmem:[#allocation0] sm:$0x3]
    %59 = vrot.lane.b32.xlu0 %v58, 56
    %v60 = vpop.permute.xlu0 %59
    %vm61 = vcmask 64512
    %s62 = scalar_lea.vmem %s1, 9
    %63 = vst.msk [vmem:[%s62] ss:$16 sm:$0x3] %vm61, %v60
    %v64 = vld [vmem:[#allocation0] sm:$0x3]
    %65 = vrot.lane.b32.xlu0 %v64, 48
    %v66 = vpop.permute.xlu0 %65
    %vm67 = vcmask 64512
    %s68 = scalar_lea.vmem %s1, 10
    %69 = vst.msk [vmem:[%s68] ss:$16 sm:$0x3] %vm67, %v66
    %v70 = vld [vmem:[#allocation0] sm:$0x3]
    %71 = vrot.lane.b32.xlu0 %v70, 40
    %v72 = vpop.permute.xlu0 %71
    %vm73 = vcmask 64512
    %s74 = scalar_lea.vmem %s1, 11
    %75 = vst.msk [vmem:[%s74] ss:$16 sm:$0x3] %vm73, %v72
    %v76 = vld [vmem:[#allocation0] sm:$0x3]
    %77 = vrot.lane.b32.xlu0 %v76, 32
    %v78 = vpop.permute.xlu0 %77
    %vm79 = vcmask 64512
    %s80 = scalar_lea.vmem %s1, 12
    %81 = vst.msk [vmem:[%s80] ss:$16 sm:$0x3] %vm79, %v78
    %v82 = vld [vmem:[#allocation0] sm:$0x3]
    %83 = vrot.lane.b32.xlu0 %v82, 24
    %v84 = vpop.permute.xlu0 %83
    %vm85 = vcmask 64512
    %s86 = scalar_lea.vmem %s1, 13
    %87 = vst.msk [vmem:[%s86] ss:$16 sm:$0x3] %vm85, %v84
    %v88 = vld [vmem:[#allocation0] sm:$0x3]
    %89 = vrot.lane.b32.xlu0 %v88, 16
    %v90 = vpop.permute.xlu0 %89
    %vm91 = vcmask 64512
    %s92 = scalar_lea.vmem %s1, 14
    %93 = vst.msk [vmem:[%s92] ss:$16 sm:$0x3] %vm91, %v90
    %v94 = vld [vmem:[#allocation0] sm:$0x3]
    %95 = vrot.lane.b32.xlu0 %v94, 8
    %v96 = vpop.permute.xlu0 %95
    %vm97 = vcmask 64512
    %s98 = scalar_lea.vmem %s1, 15
    %99 = vst.msk [vmem:[%s98] ss:$16 sm:$0x3] %vm97, %v96

// kernel: tile.13
$region0: #{tile.13}
  #allocation0 [shape = 's32[1]{0}', space=sflag, size = 0x4, scoped, tag = 'scoped memory for tile.13']
  %s0 = inlined_call_operand.vmem [shape: f32[8], index: 0, kind: input, shape index: {}]
  %s1 = inlined_call_operand.vmem [shape: f32[32,8], index: 1, kind: output, shape index: {}]
  // Predicated region
  $region2: #{tile.13} parent=0 // pred_check
    _
  $region3: #{tile.13} parent=0 // pred_check_branch
    %3 = sbr.rel (0) target = $region5
  $region4: #{tile.13} parent=0 // pred_region
    _
  $region5: #{tile.13} parent=0 // pred_fallthru
    _
  %v4 = vld [vmem:[%s0] ss:$0 sm:$0xff]
  %5 = vst [vmem:[%s1] sm:$0xff] %v4
  %s6 = scalar_lea.vmem %s1, 8
  %7 = vst [vmem:[%s6] sm:$0xff] %v4
  %s8 = scalar_lea.vmem %s1, 16
  %9 = vst [vmem:[%s8] sm:$0xff] %v4
  %s10 = scalar_lea.vmem %s1, 24
  %11 = vst [vmem:[%s10] sm:$0xff] %v4

// kernel: tile.14
$region0: #{tile.14}
  %s0 = inlined_call_operand.vmem [shape: f32[32,8], index: 0, kind: input, shape index: {}]
  %s1 = inlined_call_operand.vmem [shape: f32[1,256], index: 1, kind: output, shape index: {}]
  $region1: #{tile.14} parent=0
    #allocation0 [shape = 'u8[8192]{0}', space=vmem, size = 0x2000, scoped, tag = 'scoped mem for output reshape']
    %s2 = smov 3
    %v3 = vld [vmem:[%s0] ss:$16 sm:%s2]
    %vm4 = vcmask 64512
    %5 = vst.msk [vmem:[#allocation0] ss:$8 sm:$0x3] %vm4, %v3
    %s6 = scalar_lea.vmem %s0, 15
    %s7 = smov 3
    %v8 = vld [vmem:[%s6] ss:$16 sm:%s7]
    %9 = vrot.lane.b32.xlu0 %v8, 120
    %v10 = vpop.permute.xlu0 %9
    %vm11 = vcmask 1048512
    %12 = vst.msk [vmem:[#allocation0] ss:$8 sm:$0x3] %vm11, %v10
    %s13 = scalar_lea.vmem %s0, 14
    %s14 = smov 3
    %v15 = vld [vmem:[%s13] ss:$16 sm:%s14]
    %16 = vrot.lane.b32.xlu0 %v15, 112
    %v17 = vpop.permute.xlu0 %16
    %vm18 = vcmask 982912
    %19 = vst.msk [vmem:[#allocation0] ss:$8 sm:$0x3] %vm18, %v17
    %s20 = scalar_lea.vmem %s0, 13
    %s21 = smov 3
    %v22 = vld [vmem:[%s20] ss:$16 sm:%s21]
    %23 = vrot.lane.b32.xlu0 %v22, 104
    %v24 = vpop.permute.xlu0 %23
    %vm25 = vcmask 917312
    %26 = vst.msk [vmem:[#allocation0] ss:$8 sm:$0x3] %vm25, %v24
    %s27 = scalar_lea.vmem %s0, 12
    %s28 = smov 3
    %v29 = vld [vmem:[%s27] ss:$16 sm:%s28]
    %30 = vrot.lane.b32.xlu0 %v29, 96
    %v31 = vpop.permute.xlu0 %30
    %vm32 = vcmask 851712
    %33 = vst.msk [vmem:[#allocation0] ss:$8 sm:$0x3] %vm32, %v31
    %s34 = scalar_lea.vmem %s0, 11
    %s35 = smov 3
    %v36 = vld [vmem:[%s34] ss:$16 sm:%s35]
    %37 = vrot.lane.b32.xlu0 %v36, 88
    %v38 = vpop.permute.xlu0 %37
    %vm39 = vcmask 786112
    %40 = vst.msk [vmem:[#allocation0] ss:$8 sm:$0x3] %vm39, %v38
    %s41 = scalar_lea.vmem %s0, 10
    %s42 = smov 3
    %v43 = vld [vmem:[%s41] ss:$16 sm:%s42]
    %44 = vrot.lane.b32.xlu0 %v43, 80
    %v45 = vpop.permute.xlu0 %44
    %vm46 = vcmask 720512
    %47 = vst.msk [vmem:[#allocation0] ss:$8 sm:$0x3] %vm46, %v45
    %s48 = scalar_lea.vmem %s0, 9
    %s49 = smov 3
    %v50 = vld [vmem:[%s48] ss:$16 sm:%s49]
    %51 = vrot.lane.b32.xlu0 %v50, 72
    %v52 = vpop.permute.xlu0 %51
    %vm53 = vcmask 654912
    %54 = vst.msk [vmem:[#allocation0] ss:$8 sm:$0x3] %vm53, %v52
    %s55 = scalar_lea.vmem %s0, 8
    %s56 = smov 3
    %v57 = vld [vmem:[%s55] ss:$16 sm:%s56]
    %58 = vrot.lane.b32.xlu0 %v57, 64
    %v59 = vpop.permute.xlu0 %58
    %vm60 = vcmask 589312
    %61 = vst.msk [vmem:[#allocation0] ss:$8 sm:$0x3] %vm60, %v59
    %s62 = scalar_lea.vmem %s0, 7
    %s63 = smov 3
    %v64 = vld [vmem:[%s62] ss:$16 sm:%s63]
    %65 = vrot.lane.b32.xlu0 %v64, 56
    %v66 = vpop.permute.xlu0 %65
    %vm67 = vcmask 523712
    %68 = vst.msk [vmem:[#allocation0] ss:$8 sm:$0x3] %vm67, %v66
    %s69 = scalar_lea.vmem %s0, 6
    %s70 = smov 3
    %v71 = vld [vmem:[%s69] ss:$16 sm:%s70]
    %72 = vrot.lane.b32.xlu0 %v71, 48
    %v73 = vpop.permute.xlu0 %72
    %vm74 = vcmask 458112
    %75 = vst.msk [vmem:[#allocation0] ss:$8 sm:$0x3] %vm74, %v73
    %s76 = scalar_lea.vmem %s0, 5
    %s77 = smov 3
    %v78 = vld [vmem:[%s76] ss:$16 sm:%s77]
    %79 = vrot.lane.b32.xlu0 %v78, 40
    %v80 = vpop.permute.xlu0 %79
    %vm81 = vcmask 392512
    %82 = vst.msk [vmem:[#allocation0] ss:$8 sm:$0x3] %vm81, %v80
    %s83 = scalar_lea.vmem %s0, 4
    %s84 = smov 3
    %v85 = vld [vmem:[%s83] ss:$16 sm:%s84]
    %86 = vrot.lane.b32.xlu0 %v85, 32
    %v87 = vpop.permute.xlu0 %86
    %vm88 = vcmask 326912
    %89 = vst.msk [vmem:[#allocation0] ss:$8 sm:$0x3] %vm88, %v87
    %s90 = scalar_lea.vmem %s0, 3
    %s91 = smov 3
    %v92 = vld [vmem:[%s90] ss:$16 sm:%s91]
    %93 = vrot.lane.b32.xlu0 %v92, 24
    %v94 = vpop.permute.xlu0 %93
    %vm95 = vcmask 261312
    %96 = vst.msk [vmem:[#allocation0] ss:$8 sm:$0x3] %vm95, %v94
    %s97 = scalar_lea.vmem %s0, 2
    %s98 = smov 3
    %v99 = vld [vmem:[%s97] ss:$16 sm:%s98]
    %100 = vrot.lane.b32.xlu0 %v99, 16
    %v101 = vpop.permute.xlu0 %100
    %vm102 = vcmask 195712
    %103 = vst.msk [vmem:[#allocation0] ss:$8 sm:$0x3] %vm102, %v101
    %s104 = scalar_lea.vmem %s0, 1
    %s105 = smov 3
    %v106 = vld [vmem:[%s104] ss:$16 sm:%s105]
    %107 = vrot.lane.b32.xlu0 %v106, 8
    %v108 = vpop.permute.xlu0 %107
    %vm109 = vcmask 130112
    %110 = vst.msk [vmem:[#allocation0] ss:$8 sm:$0x3] %vm109, %v108
    %s112 = sshll.u32 1, 1
    %s113 = ssub.s32 %s112, 1
    %v115 = vld [vmem:[#allocation0] sm:%s113]
    %s116 = sshll.u32 1, 1
    %s117 = ssub.s32 %s116, 1
    %118 = vst [vmem:[%s1] sm:%s117] %v115
    %s119 = scalar_lea.vmem [#allocation0], 8
    %v120 = vld [vmem:[%s119] sm:%s113]
    %s121 = sshll.u32 1, 1
    %s122 = ssub.s32 %s121, 1
    %s123 = scalar_lea.vmem %s1, 1
    %124 = vst [vmem:[%s123] sm:%s122] %v120

// kernel: factorized_reduce.3
$region0: #{factorized_reduce.3}
  #allocation0 [shape = 'u32[]', space=smem, size = 0x4, offset = 0x4, fixed_abs, tag = 'smem constant byte address 0x4 - core index']
  #allocation1 [shape = 'u32[144,128]{1,0:T(1,128)}', space=vmem, size = 0x12000, scoped, tag = 'internal scratch']
  %s0 = inlined_call_operand.vmem [shape: f32[8,128], index: 0, kind: input, shape index: {}]
  %s1 = inlined_call_operand.vmem [shape: f32[8,128], index: 1, kind: input, shape index: {}]
  %s2 = inlined_call_operand.vmem [shape: f32[128,256], index: 2, kind: input, shape index: {}]
  %s3 = inlined_call_operand.vmem [shape: f32[128,256], index: 3, kind: input, shape index: {}]
  %s4 = inlined_call_operand.vmem [shape: f32[1,256], index: 4, kind: input, shape index: {}]
  %s5 = inlined_call_operand.vmem [shape: f32[1,256], index: 5, kind: input, shape index: {}]
  %s6 = inlined_call_operand.vmem [shape: f32[8,256], index: 6, kind: output, shape index: {}]
  %s7 = sld [smem:[#allocation0]]
  $region34: #{factorized_reduce.3} parent=0
    _
  %s9 = ssub.s32 1, %s7
  %s10 = scalar_select 0, %s9, %s7
  // Predicated region
  $region2: #{factorized_reduce.3} parent=0 // pred_check
    _
  $region3: #{factorized_reduce.3} parent=0 // pred_check_branch
    %12 = sbr.rel (0) target = $region5
  $region4: #{factorized_reduce.3} parent=0 // pred_region
    _
  $region5: #{factorized_reduce.3} parent=0 // pred_fallthru
    _
  // Predicated region
  $region6: #{factorized_reduce.3} parent=0 // pred_check
    _
  $region7: #{factorized_reduce.3} parent=0 // pred_check_branch
    %14 = sbr.rel (0) target = $region9
  $region8: #{factorized_reduce.3} parent=0 // pred_region
    _
  $region9: #{factorized_reduce.3} parent=0 // pred_fallthru
    _
  // Predicated region
  $region10: #{factorized_reduce.3} parent=0 // pred_check
    _
  $region11: #{factorized_reduce.3} parent=0 // pred_check_branch
    %16 = sbr.rel (0) target = $region13
  $region12: #{factorized_reduce.3} parent=0 // pred_region
    _
  $region13: #{factorized_reduce.3} parent=0 // pred_fallthru
    _
  // Predicated region
  $region14: #{factorized_reduce.3} parent=0 // pred_check
    _
  $region15: #{factorized_reduce.3} parent=0 // pred_check_branch
    %18 = sbr.rel (0) target = $region17
  $region16: #{factorized_reduce.3} parent=0 // pred_region
    _
  $region17: #{factorized_reduce.3} parent=0 // pred_fallthru
    _
  // Predicated region
  $region18: #{factorized_reduce.3} parent=0 // pred_check
    _
  $region19: #{factorized_reduce.3} parent=0 // pred_check_branch
    %20 = sbr.rel (0) target = $region21
  $region20: #{factorized_reduce.3} parent=0 // pred_region
    _
  $region21: #{factorized_reduce.3} parent=0 // pred_fallthru
    _
  // Predicated region
  $region22: #{factorized_reduce.3} parent=0 // pred_check
    _
  $region23: #{factorized_reduce.3} parent=0 // pred_check_branch
    %22 = sbr.rel (0) target = $region25
  $region24: #{factorized_reduce.3} parent=0 // pred_region
    _
  $region25: #{factorized_reduce.3} parent=0 // pred_fallthru
    _
  %v23 = vld [vmem:[%s0] sm:$0xff]
  %v24 = vmax.f32 %v23, 0.0
  %v25 = vld [vmem:[%s2] sm:$0xff]
  %v26 = vld [vmem:[%s2 + $0x8] sm:$0xff]
  %v27 = vld [vmem:[%s2 + $0x10] sm:$0xff]
  %v28 = vld [vmem:[%s2 + $0x18] sm:$0xff]
  %v29 = vld [vmem:[%s2 + $0x20] sm:$0xff]
  %v30 = vld [vmem:[%s2 + $0x28] sm:$0xff]
  %v31 = vld [vmem:[%s2 + $0x30] sm:$0xff]
  %v32 = vld [vmem:[%s2 + $0x38] sm:$0xff]
  %v33 = vld [vmem:[%s2 + $0x40] sm:$0xff]
  %v34 = vld [vmem:[%s2 + $0x48] sm:$0xff]
  %v35 = vld [vmem:[%s2 + $0x50] sm:$0xff]
  %v36 = vld [vmem:[%s2 + $0x58] sm:$0xff]
  %v37 = vld [vmem:[%s2 + $0x60] sm:$0xff]
  %v38 = vld [vmem:[%s2 + $0x68] sm:$0xff]
  %v39 = vld [vmem:[%s2 + $0x70] sm:$0xff]
  %v40 = vld [vmem:[%s2 + $0x78] sm:$0xff]
  %v41 = vld [vmem:[%s2 + $0x80] sm:$0xff]
  %v42 = vld [vmem:[%s2 + $0x88] sm:$0xff]
  %v43 = vld [vmem:[%s2 + $0x90] sm:$0xff]
  %v44 = vld [vmem:[%s2 + $0x98] sm:$0xff]
  %v45 = vld [vmem:[%s2 + $0xa0] sm:$0xff]
  %v46 = vld [vmem:[%s2 + $0xa8] sm:$0xff]
  %v47 = vld [vmem:[%s2 + $0xb0] sm:$0xff]
  %v48 = vld [vmem:[%s2 + $0xb8] sm:$0xff]
  %v49 = vld [vmem:[%s2 + $0xc0] sm:$0xff]
  %v50 = vld [vmem:[%s2 + $0xc8] sm:$0xff]
  %v51 = vld [vmem:[%s2 + $0xd0] sm:$0xff]
  %v52 = vld [vmem:[%s2 + $0xd8] sm:$0xff]
  %v53 = vld [vmem:[%s2 + $0xe0] sm:$0xff]
  %v54 = vld [vmem:[%s2 + $0xe8] sm:$0xff]
  %v55 = vld [vmem:[%s2 + $0xf0] sm:$0xff]
  %v56 = vld [vmem:[%s2 + $0xf8] sm:$0xff]
  %v57 = vld [vmem:[%s1] sm:$0xff]
  %v58 = vmax.f32 %v57, 0.0
  %v59 = vld [vmem:[%s3] sm:$0xff]
  %v60 = vld [vmem:[%s3 + $0x8] sm:$0xff]
  %v61 = vld [vmem:[%s3 + $0x10] sm:$0xff]
  %v62 = vld [vmem:[%s3 + $0x18] sm:$0xff]
  %v63 = vld [vmem:[%s3 + $0x20] sm:$0xff]
  %v64 = vld [vmem:[%s3 + $0x28] sm:$0xff]
  %v65 = vld [vmem:[%s3 + $0x30] sm:$0xff]
  %v66 = vld [vmem:[%s3 + $0x38] sm:$0xff]
  %v67 = vld [vmem:[%s3 + $0x40] sm:$0xff]
  %v68 = vld [vmem:[%s3 + $0x48] sm:$0xff]
  %v69 = vld [vmem:[%s3 + $0x50] sm:$0xff]
  %v70 = vld [vmem:[%s3 + $0x58] sm:$0xff]
  %v71 = vld [vmem:[%s3 + $0x60] sm:$0xff]
  %v72 = vld [vmem:[%s3 + $0x68] sm:$0xff]
  %v73 = vld [vmem:[%s3 + $0x70] sm:$0xff]
  %v74 = vld [vmem:[%s3 + $0x78] sm:$0xff]
  %v75 = vld [vmem:[%s3 + $0x80] sm:$0xff]
  %v76 = vld [vmem:[%s3 + $0x88] sm:$0xff]
  %v77 = vld [vmem:[%s3 + $0x90] sm:$0xff]
  %v78 = vld [vmem:[%s3 + $0x98] sm:$0xff]
  %v79 = vld [vmem:[%s3 + $0xa0] sm:$0xff]
  %v80 = vld [vmem:[%s3 + $0xa8] sm:$0xff]
  %v81 = vld [vmem:[%s3 + $0xb0] sm:$0xff]
  %v82 = vld [vmem:[%s3 + $0xb8] sm:$0xff]
  %v83 = vld [vmem:[%s3 + $0xc0] sm:$0xff]
  %v84 = vld [vmem:[%s3 + $0xc8] sm:$0xff]
  %v85 = vld [vmem:[%s3 + $0xd0] sm:$0xff]
  %v86 = vld [vmem:[%s3 + $0xd8] sm:$0xff]
  %v87 = vld [vmem:[%s3 + $0xe0] sm:$0xff]
  %v88 = vld [vmem:[%s3 + $0xe8] sm:$0xff]
  %v89 = vld [vmem:[%s3 + $0xf0] sm:$0xff]
  %v90 = vld [vmem:[%s3 + $0xf8] sm:$0xff]
  %91 = vmatprep.subr.mxu0 %v90
  %92 = vmatpush1.msra.mxu0 %v89
  %93 = vmatprep.subr.mxu0 %v88
  %94 = vmatpush1.msra.mxu0 %v87
  %95 = vmatprep.subr.mxu0 %v86
  %96 = vmatpush1.msra.mxu0 %v85
  %97 = vmatprep.subr.mxu0 %v84
  %98 = vmatpush1.msra.mxu0 %v83
  %99 = vmatprep.subr.mxu0 %v82
  %100 = vmatpush1.msra.mxu0 %v81
  %101 = vmatprep.subr.mxu0 %v80
  %102 = vmatpush1.msra.mxu0 %v79
  %103 = vmatprep.subr.mxu0 %v78
  %104 = vmatpush1.msra.mxu0 %v77
  %105 = vmatprep.subr.mxu0 %v76
  %106 = vmatpush1.msra.mxu0 %v75
  %107 = vmatprep.subr.mxu0 %v74
  %108 = vmatpush1.msra.mxu0 %v73
  %109 = vmatprep.subr.mxu0 %v72
  %110 = vmatpush1.msra.mxu0 %v71
  %111 = vmatprep.subr.mxu0 %v70
  %112 = vmatpush1.msra.mxu0 %v69
  %113 = vmatprep.subr.mxu0 %v68
  %114 = vmatpush1.msra.mxu0 %v67
  %115 = vmatprep.subr.mxu0 %v66
  %116 = vmatpush1.msra.mxu0 %v65
  %117 = vmatprep.subr.mxu0 %v64
  %118 = vmatpush1.msra.mxu0 %v63
  %119 = vmatprep.subr.mxu0 %v62
  %120 = vmatpush1.msra.mxu0 %v61
  %121 = vmatprep.subr.mxu0 %v60
  %122 = vmatpush1.msra.mxu0 %v59
  %123 = vmatprep.subr.mxu0 0.0
  %124 = vmatpush2.msra.mxu0 0.0
  %125 = vmatprep.subr.mxu0 0.0
  %126 = vmatpush2.msra.mxu0 0.0
  %127 = vmatprep.subr.mxu0 0.0
  %128 = vmatpush2.msra.mxu0 0.0
  %129 = vmatprep.subr.mxu0 0.0
  %130 = vmatpush2.msra.mxu0 0.0
  %131 = vmatprep.subr.mxu0 0.0
  %132 = vmatpush2.msra.mxu0 0.0
  %133 = vmatprep.subr.mxu0 0.0
  %134 = vmatpush2.msra.mxu0 0.0
  %135 = vmatprep.subr.mxu0 0.0
  %136 = vmatpush2.msra.mxu0 0.0
  %137 = vmatprep.subr.mxu0 0.0
  %138 = vmatpush2.msra.mxu0 0.0
  %139 = vmatprep.subr.mxu0 0.0
  %140 = vmatpush2.msra.mxu0 0.0
  %141 = vmatprep.subr.mxu0 0.0
  %142 = vmatpush2.msra.mxu0 0.0
  %143 = vmatprep.subr.mxu0 0.0
  %144 = vmatpush2.msra.mxu0 0.0
  %145 = vmatprep.subr.mxu0 0.0
  %146 = vmatpush2.msra.mxu0 0.0
  %147 = vmatprep.subr.mxu0 0.0
  %148 = vmatpush2.msra.mxu0 0.0
  %149 = vmatprep.subr.mxu0 0.0
  %150 = vmatpush2.msra.mxu0 0.0
  %151 = vmatprep.subr.mxu0 0.0
  %152 = vmatpush2.msra.mxu0 0.0
  %153 = vmatprep.subr.mxu0 0.0
  %154 = vmatpush2.msra.mxu0 0.0
  %155 = vmatprep.mubr.f32.mxu0 0.0
  %156 = vmatmul.mubr.f32.gmra.mxu0 %v58
  %v157 = vpop.f32.mrf.mxu0
  %v158 = vadd.f32 0.0, %v157
  %v159 = vpop.f32.mrf.mxu0
  %v160 = vadd.f32 0.0, %v159
  %161 = vdwg.mxu0
  %162 = vmatprep.subr.mxu0 %v56
  %163 = vmatpush1.msra.mxu0 %v55
  %164 = vmatprep.subr.mxu0 %v54
  %165 = vmatpush1.msra.mxu0 %v53
  %166 = vmatprep.subr.mxu0 %v52
  %167 = vmatpush1.msra.mxu0 %v51
  %168 = vmatprep.subr.mxu0 %v50
  %169 = vmatpush1.msra.mxu0 %v49
  %170 = vmatprep.subr.mxu0 %v48
  %171 = vmatpush1.msra.mxu0 %v47
  %172 = vmatprep.subr.mxu0 %v46
  %173 = vmatpush1.msra.mxu0 %v45
  %174 = vmatprep.subr.mxu0 %v44
  %175 = vmatpush1.msra.mxu0 %v43
  %176 = vmatprep.subr.mxu0 %v42
  %177 = vmatpush1.msra.mxu0 %v41
  %178 = vmatprep.subr.mxu0 %v40
  %179 = vmatpush1.msra.mxu0 %v39
  %180 = vmatprep.subr.mxu0 %v38
  %181 = vmatpush1.msra.mxu0 %v37
  %182 = vmatprep.subr.mxu0 %v36
  %183 = vmatpush1.msra.mxu0 %v35
  %184 = vmatprep.subr.mxu0 %v34
  %185 = vmatpush1.msra.mxu0 %v33
  %186 = vmatprep.subr.mxu0 %v32
  %187 = vmatpush1.msra.mxu0 %v31
  %188 = vmatprep.subr.mxu0 %v30
  %189 = vmatpush1.msra.mxu0 %v29
  %190 = vmatprep.subr.mxu0 %v28
  %191 = vmatpush1.msra.mxu0 %v27
  %192 = vmatprep.subr.mxu0 %v26
  %193 = vmatpush1.msra.mxu0 %v25
  %194 = vmatprep.subr.mxu0 0.0
  %195 = vmatpush2.msra.mxu0 0.0
  %196 = vmatprep.subr.mxu0 0.0
  %197 = vmatpush2.msra.mxu0 0.0
  %198 = vmatprep.subr.mxu0 0.0
  %199 = vmatpush2.msra.mxu0 0.0
  %200 = vmatprep.subr.mxu0 0.0
  %201 = vmatpush2.msra.mxu0 0.0
  %202 = vmatprep.subr.mxu0 0.0
  %203 = vmatpush2.msra.mxu0 0.0
  %204 = vmatprep.subr.mxu0 0.0
  %205 = vmatpush2.msra.mxu0 0.0
  %206 = vmatprep.subr.mxu0 0.0
  %207 = vmatpush2.msra.mxu0 0.0
  %208 = vmatprep.subr.mxu0 0.0
  %209 = vmatpush2.msra.mxu0 0.0
  %210 = vmatprep.subr.mxu0 0.0
  %211 = vmatpush2.msra.mxu0 0.0
  %212 = vmatprep.subr.mxu0 0.0
  %213 = vmatpush2.msra.mxu0 0.0
  %214 = vmatprep.subr.mxu0 0.0
  %215 = vmatpush2.msra.mxu0 0.0
  %216 = vmatprep.subr.mxu0 0.0
  %217 = vmatpush2.msra.mxu0 0.0
  %218 = vmatprep.subr.mxu0 0.0
  %219 = vmatpush2.msra.mxu0 0.0
  %220 = vmatprep.subr.mxu0 0.0
  %221 = vmatpush2.msra.mxu0 0.0
  %222 = vmatprep.subr.mxu0 0.0
  %223 = vmatpush2.msra.mxu0 0.0
  %224 = vmatprep.subr.mxu0 0.0
  %225 = vmatpush2.msra.mxu0 0.0
  %226 = vmatprep.mubr.f32.mxu0 0.0
  %227 = vmatmul.mubr.f32.gmra.mxu0 %v24
  %v228 = vpop.f32.mrf.mxu0
  %v229 = vadd.f32 %v158, %v228
  %v230 = vpop.f32.mrf.mxu0
  %v231 = vadd.f32 %v160, %v230
  %232 = vdwg.mxu0
  %v233 = vld [vmem:[%s4] sm:$0x3]
  %v235 = vlaneseq
  %v236 = vshrl.u32 %v235, 7
  %v237 = vsub.s32 0, %v236
  %v238 = vrot.slane %v233, %v237
  %v239 = vlaneseq
  %v240 = vshrl.u32 %v239, 7
  %v241 = vsub.s32 1, %v240
  %v242 = vrot.slane %v233, %v241
  %v245 = vmul.f32 %v229, %v238
  %v246 = vmul.f32 %v231, %v242
  %v247 = vld [vmem:[%s5] sm:$0x3]
  %v249 = vlaneseq
  %v250 = vshrl.u32 %v249, 7
  %v251 = vsub.s32 0, %v250
  %v252 = vrot.slane %v247, %v251
  %v253 = vlaneseq
  %v254 = vshrl.u32 %v253, 7
  %v255 = vsub.s32 1, %v254
  %v256 = vrot.slane %v247, %v255
  %v259 = vadd.f32 %v245, %v252
  %v260 = vadd.f32 %v246, %v256
  %261 = vst [vmem:[%s6] sm:$0xff] %v259
  %262 = vst [vmem:[%s6 + $0x8] sm:$0xff] %v260
  // Predicated region
  $region26: #{factorized_reduce.3} parent=0 // pred_check
    _
  $region27: #{factorized_reduce.3} parent=0 // pred_check_branch
    %264 = sbr.rel (0) target = $region29
  $region28: #{factorized_reduce.3} parent=0 // pred_region
    _
  $region29: #{factorized_reduce.3} parent=0 // pred_fallthru
    _
  // Predicated region
  $region30: #{factorized_reduce.3} parent=0 // pred_check
    _
  $region31: #{factorized_reduce.3} parent=0 // pred_check_branch
    %266 = sbr.rel (0) target = $region33
  $region32: #{factorized_reduce.3} parent=0 // pred_region
    _
  $region33: #{factorized_reduce.3} parent=0 // pred_fallthru
    _

// kernel: factorized_reduce.2
$region0: #{factorized_reduce.2}
  #allocation0 [shape = 'u32[]', space=smem, size = 0x4, offset = 0x4, fixed_abs, tag = 'smem constant byte address 0x4 - core index']
  #allocation1 [shape = 'u32[144,128]{1,0:T(1,128)}', space=vmem, size = 0x12000, scoped, tag = 'internal scratch']
  %s0 = inlined_call_operand.vmem [shape: f32[8,128], index: 0, kind: input, shape index: {}]
  %s1 = inlined_call_operand.vmem [shape: f32[8,128], index: 1, kind: input, shape index: {}]
  %s2 = inlined_call_operand.vmem [shape: f32[128,256], index: 2, kind: input, shape index: {}]
  %s3 = inlined_call_operand.vmem [shape: f32[128,256], index: 3, kind: input, shape index: {}]
  %s4 = inlined_call_operand.vmem [shape: f32[1,2,256], index: 4, kind: output, shape index: {}]
  %s5 = sld [smem:[#allocation0]]
  $region26: #{factorized_reduce.2} parent=0
    _
  %s7 = ssub.s32 1, %s5
  %s8 = scalar_select 0, %s7, %s5
  // Predicated region
  $region2: #{factorized_reduce.2} parent=0 // pred_check
    _
  $region3: #{factorized_reduce.2} parent=0 // pred_check_branch
    %10 = sbr.rel (0) target = $region5
  $region4: #{factorized_reduce.2} parent=0 // pred_region
    _
  $region5: #{factorized_reduce.2} parent=0 // pred_fallthru
    _
  // Predicated region
  $region6: #{factorized_reduce.2} parent=0 // pred_check
    _
  $region7: #{factorized_reduce.2} parent=0 // pred_check_branch
    %12 = sbr.rel (0) target = $region9
  $region8: #{factorized_reduce.2} parent=0 // pred_region
    _
  $region9: #{factorized_reduce.2} parent=0 // pred_fallthru
    _
  // Predicated region
  $region10: #{factorized_reduce.2} parent=0 // pred_check
    _
  $region11: #{factorized_reduce.2} parent=0 // pred_check_branch
    %14 = sbr.rel (0) target = $region13
  $region12: #{factorized_reduce.2} parent=0 // pred_region
    _
  $region13: #{factorized_reduce.2} parent=0 // pred_fallthru
    _
  // Predicated region
  $region14: #{factorized_reduce.2} parent=0 // pred_check
    _
  $region15: #{factorized_reduce.2} parent=0 // pred_check_branch
    %16 = sbr.rel (0) target = $region17
  $region16: #{factorized_reduce.2} parent=0 // pred_region
    _
  $region17: #{factorized_reduce.2} parent=0 // pred_fallthru
    _
  %v17 = vld [vmem:[%s0] sm:$0xff]
  %v18 = vmax.f32 %v17, 0.0
  %v19 = vld [vmem:[%s2] sm:$0xff]
  %v20 = vld [vmem:[%s2 + $0x8] sm:$0xff]
  %v21 = vld [vmem:[%s2 + $0x10] sm:$0xff]
  %v22 = vld [vmem:[%s2 + $0x18] sm:$0xff]
  %v23 = vld [vmem:[%s2 + $0x20] sm:$0xff]
  %v24 = vld [vmem:[%s2 + $0x28] sm:$0xff]
  %v25 = vld [vmem:[%s2 + $0x30] sm:$0xff]
  %v26 = vld [vmem:[%s2 + $0x38] sm:$0xff]
  %v27 = vld [vmem:[%s2 + $0x40] sm:$0xff]
  %v28 = vld [vmem:[%s2 + $0x48] sm:$0xff]
  %v29 = vld [vmem:[%s2 + $0x50] sm:$0xff]
  %v30 = vld [vmem:[%s2 + $0x58] sm:$0xff]
  %v31 = vld [vmem:[%s2 + $0x60] sm:$0xff]
  %v32 = vld [vmem:[%s2 + $0x68] sm:$0xff]
  %v33 = vld [vmem:[%s2 + $0x70] sm:$0xff]
  %v34 = vld [vmem:[%s2 + $0x78] sm:$0xff]
  %v35 = vld [vmem:[%s2 + $0x80] sm:$0xff]
  %v36 = vld [vmem:[%s2 + $0x88] sm:$0xff]
  %v37 = vld [vmem:[%s2 + $0x90] sm:$0xff]
  %v38 = vld [vmem:[%s2 + $0x98] sm:$0xff]
  %v39 = vld [vmem:[%s2 + $0xa0] sm:$0xff]
  %v40 = vld [vmem:[%s2 + $0xa8] sm:$0xff]
  %v41 = vld [vmem:[%s2 + $0xb0] sm:$0xff]
  %v42 = vld [vmem:[%s2 + $0xb8] sm:$0xff]
  %v43 = vld [vmem:[%s2 + $0xc0] sm:$0xff]
  %v44 = vld [vmem:[%s2 + $0xc8] sm:$0xff]
  %v45 = vld [vmem:[%s2 + $0xd0] sm:$0xff]
  %v46 = vld [vmem:[%s2 + $0xd8] sm:$0xff]
  %v47 = vld [vmem:[%s2 + $0xe0] sm:$0xff]
  %v48 = vld [vmem:[%s2 + $0xe8] sm:$0xff]
  %v49 = vld [vmem:[%s2 + $0xf0] sm:$0xff]
  %v50 = vld [vmem:[%s2 + $0xf8] sm:$0xff]
  %v51 = vld [vmem:[%s1] sm:$0xff]
  %v52 = vmax.f32 %v51, 0.0
  %v53 = vld [vmem:[%s3] sm:$0xff]
  %v54 = vld [vmem:[%s3 + $0x8] sm:$0xff]
  %v55 = vld [vmem:[%s3 + $0x10] sm:$0xff]
  %v56 = vld [vmem:[%s3 + $0x18] sm:$0xff]
  %v57 = vld [vmem:[%s3 + $0x20] sm:$0xff]
  %v58 = vld [vmem:[%s3 + $0x28] sm:$0xff]
  %v59 = vld [vmem:[%s3 + $0x30] sm:$0xff]
  %v60 = vld [vmem:[%s3 + $0x38] sm:$0xff]
  %v61 = vld [vmem:[%s3 + $0x40] sm:$0xff]
  %v62 = vld [vmem:[%s3 + $0x48] sm:$0xff]
  %v63 = vld [vmem:[%s3 + $0x50] sm:$0xff]
  %v64 = vld [vmem:[%s3 + $0x58] sm:$0xff]
  %v65 = vld [vmem:[%s3 + $0x60] sm:$0xff]
  %v66 = vld [vmem:[%s3 + $0x68] sm:$0xff]
  %v67 = vld [vmem:[%s3 + $0x70] sm:$0xff]
  %v68 = vld [vmem:[%s3 + $0x78] sm:$0xff]
  %v69 = vld [vmem:[%s3 + $0x80] sm:$0xff]
  %v70 = vld [vmem:[%s3 + $0x88] sm:$0xff]
  %v71 = vld [vmem:[%s3 + $0x90] sm:$0xff]
  %v72 = vld [vmem:[%s3 + $0x98] sm:$0xff]
  %v73 = vld [vmem:[%s3 + $0xa0] sm:$0xff]
  %v74 = vld [vmem:[%s3 + $0xa8] sm:$0xff]
  %v75 = vld [vmem:[%s3 + $0xb0] sm:$0xff]
  %v76 = vld [vmem:[%s3 + $0xb8] sm:$0xff]
  %v77 = vld [vmem:[%s3 + $0xc0] sm:$0xff]
  %v78 = vld [vmem:[%s3 + $0xc8] sm:$0xff]
  %v79 = vld [vmem:[%s3 + $0xd0] sm:$0xff]
  %v80 = vld [vmem:[%s3 + $0xd8] sm:$0xff]
  %v81 = vld [vmem:[%s3 + $0xe0] sm:$0xff]
  %v82 = vld [vmem:[%s3 + $0xe8] sm:$0xff]
  %v83 = vld [vmem:[%s3 + $0xf0] sm:$0xff]
  %v84 = vld [vmem:[%s3 + $0xf8] sm:$0xff]
  %85 = vmatprep.subr.mxu0 %v84
  %86 = vmatpush1.msra.mxu0 %v83
  %87 = vmatprep.subr.mxu0 %v82
  %88 = vmatpush1.msra.mxu0 %v81
  %89 = vmatprep.subr.mxu0 %v80
  %90 = vmatpush1.msra.mxu0 %v79
  %91 = vmatprep.subr.mxu0 %v78
  %92 = vmatpush1.msra.mxu0 %v77
  %93 = vmatprep.subr.mxu0 %v76
  %94 = vmatpush1.msra.mxu0 %v75
  %95 = vmatprep.subr.mxu0 %v74
  %96 = vmatpush1.msra.mxu0 %v73
  %97 = vmatprep.subr.mxu0 %v72
  %98 = vmatpush1.msra.mxu0 %v71
  %99 = vmatprep.subr.mxu0 %v70
  %100 = vmatpush1.msra.mxu0 %v69
  %101 = vmatprep.subr.mxu0 %v68
  %102 = vmatpush1.msra.mxu0 %v67
  %103 = vmatprep.subr.mxu0 %v66
  %104 = vmatpush1.msra.mxu0 %v65
  %105 = vmatprep.subr.mxu0 %v64
  %106 = vmatpush1.msra.mxu0 %v63
  %107 = vmatprep.subr.mxu0 %v62
  %108 = vmatpush1.msra.mxu0 %v61
  %109 = vmatprep.subr.mxu0 %v60
  %110 = vmatpush1.msra.mxu0 %v59
  %111 = vmatprep.subr.mxu0 %v58
  %112 = vmatpush1.msra.mxu0 %v57
  %113 = vmatprep.subr.mxu0 %v56
  %114 = vmatpush1.msra.mxu0 %v55
  %115 = vmatprep.subr.mxu0 %v54
  %116 = vmatpush1.msra.mxu0 %v53
  %117 = vmatprep.subr.mxu0 0.0
  %118 = vmatpush2.msra.mxu0 0.0
  %119 = vmatprep.subr.mxu0 0.0
  %120 = vmatpush2.msra.mxu0 0.0
  %121 = vmatprep.subr.mxu0 0.0
  %122 = vmatpush2.msra.mxu0 0.0
  %123 = vmatprep.subr.mxu0 0.0
  %124 = vmatpush2.msra.mxu0 0.0
  %125 = vmatprep.subr.mxu0 0.0
  %126 = vmatpush2.msra.mxu0 0.0
  %127 = vmatprep.subr.mxu0 0.0
  %128 = vmatpush2.msra.mxu0 0.0
  %129 = vmatprep.subr.mxu0 0.0
  %130 = vmatpush2.msra.mxu0 0.0
  %131 = vmatprep.subr.mxu0 0.0
  %132 = vmatpush2.msra.mxu0 0.0
  %133 = vmatprep.subr.mxu0 0.0
  %134 = vmatpush2.msra.mxu0 0.0
  %135 = vmatprep.subr.mxu0 0.0
  %136 = vmatpush2.msra.mxu0 0.0
  %137 = vmatprep.subr.mxu0 0.0
  %138 = vmatpush2.msra.mxu0 0.0
  %139 = vmatprep.subr.mxu0 0.0
  %140 = vmatpush2.msra.mxu0 0.0
  %141 = vmatprep.subr.mxu0 0.0
  %142 = vmatpush2.msra.mxu0 0.0
  %143 = vmatprep.subr.mxu0 0.0
  %144 = vmatpush2.msra.mxu0 0.0
  %145 = vmatprep.subr.mxu0 0.0
  %146 = vmatpush2.msra.mxu0 0.0
  %147 = vmatprep.subr.mxu0 0.0
  %148 = vmatpush2.msra.mxu0 0.0
  %149 = vmatprep.mubr.f32.mxu0 0.0
  %150 = vmatmul.mubr.f32.gmra.mxu0 %v52
  %v151 = vpop.f32.mrf.mxu0
  %v152 = vadd.f32 0.0, %v151
  %v153 = vpop.f32.mrf.mxu0
  %v154 = vadd.f32 0.0, %v153
  %155 = vdwg.mxu0
  %156 = vmatprep.subr.mxu0 %v50
  %157 = vmatpush1.msra.mxu0 %v49
  %158 = vmatprep.subr.mxu0 %v48
  %159 = vmatpush1.msra.mxu0 %v47
  %160 = vmatprep.subr.mxu0 %v46
  %161 = vmatpush1.msra.mxu0 %v45
  %162 = vmatprep.subr.mxu0 %v44
  %163 = vmatpush1.msra.mxu0 %v43
  %164 = vmatprep.subr.mxu0 %v42
  %165 = vmatpush1.msra.mxu0 %v41
  %166 = vmatprep.subr.mxu0 %v40
  %167 = vmatpush1.msra.mxu0 %v39
  %168 = vmatprep.subr.mxu0 %v38
  %169 = vmatpush1.msra.mxu0 %v37
  %170 = vmatprep.subr.mxu0 %v36
  %171 = vmatpush1.msra.mxu0 %v35
  %172 = vmatprep.subr.mxu0 %v34
  %173 = vmatpush1.msra.mxu0 %v33
  %174 = vmatprep.subr.mxu0 %v32
  %175 = vmatpush1.msra.mxu0 %v31
  %176 = vmatprep.subr.mxu0 %v30
  %177 = vmatpush1.msra.mxu0 %v29
  %178 = vmatprep.subr.mxu0 %v28
  %179 = vmatpush1.msra.mxu0 %v27
  %180 = vmatprep.subr.mxu0 %v26
  %181 = vmatpush1.msra.mxu0 %v25
  %182 = vmatprep.subr.mxu0 %v24
  %183 = vmatpush1.msra.mxu0 %v23
  %184 = vmatprep.subr.mxu0 %v22
  %185 = vmatpush1.msra.mxu0 %v21
  %186 = vmatprep.subr.mxu0 %v20
  %187 = vmatpush1.msra.mxu0 %v19
  %188 = vmatprep.subr.mxu0 0.0
  %189 = vmatpush2.msra.mxu0 0.0
  %190 = vmatprep.subr.mxu0 0.0
  %191 = vmatpush2.msra.mxu0 0.0
  %192 = vmatprep.subr.mxu0 0.0
  %193 = vmatpush2.msra.mxu0 0.0
  %194 = vmatprep.subr.mxu0 0.0
  %195 = vmatpush2.msra.mxu0 0.0
  %196 = vmatprep.subr.mxu0 0.0
  %197 = vmatpush2.msra.mxu0 0.0
  %198 = vmatprep.subr.mxu0 0.0
  %199 = vmatpush2.msra.mxu0 0.0
  %200 = vmatprep.subr.mxu0 0.0
  %201 = vmatpush2.msra.mxu0 0.0
  %202 = vmatprep.subr.mxu0 0.0
  %203 = vmatpush2.msra.mxu0 0.0
  %204 = vmatprep.subr.mxu0 0.0
  %205 = vmatpush2.msra.mxu0 0.0
  %206 = vmatprep.subr.mxu0 0.0
  %207 = vmatpush2.msra.mxu0 0.0
  %208 = vmatprep.subr.mxu0 0.0
  %209 = vmatpush2.msra.mxu0 0.0
  %210 = vmatprep.subr.mxu0 0.0
  %211 = vmatpush2.msra.mxu0 0.0
  %212 = vmatprep.subr.mxu0 0.0
  %213 = vmatpush2.msra.mxu0 0.0
  %214 = vmatprep.subr.mxu0 0.0
  %215 = vmatpush2.msra.mxu0 0.0
  %216 = vmatprep.subr.mxu0 0.0
  %217 = vmatpush2.msra.mxu0 0.0
  %218 = vmatprep.subr.mxu0 0.0
  %219 = vmatpush2.msra.mxu0 0.0
  %220 = vmatprep.mubr.f32.mxu0 0.0
  %221 = vmatmul.mubr.f32.gmra.mxu0 %v18
  %v222 = vpop.f32.mrf.mxu0
  %v223 = vadd.f32 %v152, %v222
  %v224 = vpop.f32.mrf.mxu0
  %v225 = vadd.f32 %v154, %v224
  %226 = vdwg.mxu0
  %v227 = vrot.slane %v223, 4
  %v228 = vadd.f32 %v223, %v227
  %v229 = vrot.slane %v228, 2
  %v230 = vadd.f32 %v228, %v229
  %v231 = vrot.slane %v230, 1
  %v232 = vadd.f32 %v230, %v231
  %v233 = vrot.slane %v225, 4
  %v234 = vadd.f32 %v225, %v233
  %v235 = vrot.slane %v234, 2
  %v236 = vadd.f32 %v234, %v235
  %v237 = vrot.slane %v236, 1
  %v238 = vadd.f32 %v236, %v237
  %v241 = vcombine.low %v232, %v238
  %v243 = vunpack.c.l.s4 1966171168
  %v244 = vunpack.c.0.s8 %v243
  %v245 = vlaneseq
  %v246 = vshrl.u32 %v245, 7
  %v247 = vsub.s32 %v244, %v246
  %v248 = vrot.slane %v241, %v247
  %v250 = vunpack.c.l.s4 1966171168
  %v251 = vunpack.c.0.s8 %v250
  %v252 = vlaneseq
  %v253 = vshrl.u32 %v252, 7
  %v254 = vsub.s32 %v251, %v253
  %v255 = vrot.slane %v248, %v254
  %v257 = vlaneseq
  %vm258 = vcmp.ge.s32.totalorder %v257, 0
  %vm259 = vcmp.lt.s32.totalorder %v257, 256
  %vm260 = vmand %vm258, %vm259
  %261 = vst.msk [vmem:[%s4] ss:$2 sm:$0x3] %vm260, %v255
  %v262 = vmul.f32 %v223, %v223
  %v263 = vmul.f32 %v225, %v225
  %v264 = vrot.slane %v262, 4
  %v265 = vadd.f32 %v262, %v264
  %v266 = vrot.slane %v265, 2
  %v267 = vadd.f32 %v265, %v266
  %v268 = vrot.slane %v267, 1
  %v269 = vadd.f32 %v267, %v268
  %v270 = vrot.slane %v263, 4
  %v271 = vadd.f32 %v263, %v270
  %v272 = vrot.slane %v271, 2
  %v273 = vadd.f32 %v271, %v272
  %v274 = vrot.slane %v273, 1
  %v275 = vadd.f32 %v273, %v274
  %v278 = vcombine.low %v269, %v275
  %v280 = vunpack.c.l.s4 1966171168
  %v281 = vunpack.c.0.s8 %v280
  %v282 = vlaneseq
  %v283 = vshrl.u32 %v282, 7
  %v284 = vsub.s32 %v281, %v283
  %v285 = vrot.slane %v278, %v284
  %v287 = vunpack.c.l.s4 1966171168
  %v288 = vunpack.c.0.s8 %v287
  %v289 = vlaneseq
  %v290 = vshrl.u32 %v289, 7
  %v291 = vsub.s32 %v288, %v290
  %v292 = vrot.slane %v285, %v291
  %s294 = scalar_lea.vmem %s4, 1
  %295 = vst.msk [vmem:[%s294] ss:$2 sm:$0x3] %vm260, %v292
  // Predicated region
  $region18: #{factorized_reduce.2} parent=0 // pred_check
    _
  $region19: #{factorized_reduce.2} parent=0 // pred_check_branch
    %297 = sbr.rel (0) target = $region21
  $region20: #{factorized_reduce.2} parent=0 // pred_region
    _
  $region21: #{factorized_reduce.2} parent=0 // pred_fallthru
    _
  // Predicated region
  $region22: #{factorized_reduce.2} parent=0 // pred_check
    _
  $region23: #{factorized_reduce.2} parent=0 // pred_check_branch
    %299 = sbr.rel (0) target = $region25
  $region24: #{factorized_reduce.2} parent=0 // pred_region
    _
  $region25: #{factorized_reduce.2} parent=0 // pred_fallthru
    _

</llo_original>
